<compile_context>
chip_gen: v5e
topology: v5e:2x2
jax: 0.10.0
libtpu: 0.0.40
codegen_flags: <defaults>
</compile_context>

<pallas_src>
import functools

import jax
import jax.numpy as jnp
from jax.experimental import pallas as pl
from jax.experimental.pallas import tpu as pltpu

_LANE = 128
_SUBLANE = 8


def _round_up(x, m):
    return ((x + m - 1) // m) * m


def _choose_tb(batch):
    """Batch tile: full batch if tiny, otherwise >=2 tiles (v7x dual TC), <=1024."""
    if batch <= _SUBLANE:
        return batch  # single block covering the whole (tiny) batch
    return max(_SUBLANE, min(1024, _round_up(pl.cdiv(batch, 2), _SUBLANE)))


def _mlp_kernel(*refs, num_hidden_layers):
    """refs = (x, w1, b1, ..., wH, bH, w_out, b_out, o).

    x arrives f32 and is cast to bf16 in-kernel (MXU-native); weights are bf16;
    accumulation, bias add and ReLU stay f32; output stored f32, unpadded width.
    """
    x_ref = refs[0]
    o_ref = refs[-1]
    p = refs[1:-1]

    h = x_ref[...].astype(jnp.bfloat16)  # (TB, in_dim)

    # Hidden layers: Linear -> ReLU  (f32 accumulate, bf16 re-quantize for MXU).
    for layer in range(num_hidden_layers):
        w = p[2 * layer][...]          # bf16 (k, n_pad)
        b = p[2 * layer + 1][...]      # f32  (1, n_pad)
        acc = jnp.dot(h, w, preferred_element_type=jnp.float32) + b
        h = jnp.maximum(acc, 0.0).astype(jnp.bfloat16)

    # Output projection (no activation), true output width, f32 store.
    wo = p[2 * num_hidden_layers][...]
    bo = p[2 * num_hidden_layers + 1][...]
    out = jnp.dot(h, wo, preferred_element_type=jnp.float32) + bo
    o_ref[...] = out.astype(o_ref.dtype)


def prepare_params(params):
    """One-time prep: pad hidden widths to 128 lanes, cast weights to bf16.

    params: list of (W, b) with W shaped (in, out) (== PyTorch weight.T).
    The final projection keeps its true output width (narrow HBM writeback).
    Padded rows/cols are zero, so padded hidden activations stay exactly zero.
    """
    prepared = []
    num = len(params)
    prev_pad = params[0][0].shape[0]  # flattened input dim, left unpadded
    for idx, (w, b) in enumerate(params):
        k, n = w.shape
        n_pad = n if idx == num - 1 else _round_up(n, _LANE)
        w_p = jnp.zeros((prev_pad, n_pad), jnp.float32)
        w_p = w_p.at[:k, :n].set(w.astype(jnp.float32))
        b_p = jnp.zeros((1, n_pad), jnp.float32).at[0, :n].set(b.astype(jnp.float32))
        prepared.append((w_p.astype(jnp.bfloat16), b_p))
        prev_pad = n_pad
    return prepared


def continuation_contrastive_forward(x, prepared_params):
    """x: (B, dim_sequence, dim_features); prepared_params from prepare_params()."""
    B = x.shape[0]
    x_flat = x.reshape(B, -1)                      # view, no copy
    in_dim = x_flat.shape[1]
    out_dim = prepared_params[-1][0].shape[1]
    num_hidden_layers = len(prepared_params) - 1

    tb = _choose_tb(B)
    grid = (pl.cdiv(B, tb),)

    flat_args = [x_flat]
    in_specs = [pl.BlockSpec((tb, in_dim), lambda i: (i, 0))]
    for w_p, b_p in prepared_params:
        flat_args += [w_p, b_p]
        # Constant block index -> weights/biases stay VMEM-resident across the grid.
        in_specs += [
            pl.BlockSpec(w_p.shape, lambda i: (0, 0)),
            pl.BlockSpec(b_p.shape, lambda i: (0, 0)),
        ]
    out_specs = pl.BlockSpec((tb, out_dim), lambda i: (i, 0))

    # ---- cost estimate + VMEM budget ---------------------------------------
    flops = 0
    k = in_dim
    for w_p, _ in prepared_params:
        flops += 2 * B * k * w_p.shape[1]
        k = w_p.shape[1]
    param_bytes = sum(w.size * w.dtype.itemsize + b2.size * b2.dtype.itemsize
                      for w, b2 in prepared_params)
    bytes_accessed = (x_flat.size * x_flat.dtype.itemsize
                      + B * out_dim * 4 + param_bytes)

    # Double-buffered I/O tiles + resident params, 2x headroom, capped at 32 MiB.
    io_bytes = 2 * (tb * in_dim * x_flat.dtype.itemsize + tb * out_dim * 4)
    vmem_limit = int(min(32 * 1024 * 1024,
                         max(8 * 1024 * 1024, 2 * (io_bytes + param_bytes))))

    kernel = functools.partial(_mlp_kernel, num_hidden_layers=num_hidden_layers)

    return pl.pallas_call(
        kernel,
        out_shape=jax.ShapeDtypeStruct((B, out_dim), jnp.float32),
        grid=grid,
        in_specs=in_specs,
        out_specs=out_specs,
        compiler_params=pltpu.CompilerParams(
            dimension_semantics=("parallel",),   # shard batch tiles across TCs (v7x)
            vmem_limit_bytes=vmem_limit,
        ),
        cost_estimate=pl.CostEstimate(
            flops=flops, transcendentals=0, bytes_accessed=bytes_accessed),
    )(*flat_args)


def init_params(key, in_dim, dim_layers, dim_embedding_space):
    """Deterministic Linear params; W stored (in, out) == PyTorch weight.T."""
    params = []
    dims = list(dim_layers) + [dim_embedding_space]
    for out_dim in dims:
        key, kw, kb = jax.random.split(key, 3)
        bound = 1.0 / jnp.sqrt(in_dim)
        w = jax.random.uniform(kw, (in_dim, out_dim), jnp.float32, -bound, bound)
        b = jax.random.uniform(kb, (out_dim,), jnp.float32, -bound, bound)
        params.append((w, b))
        in_dim = out_dim
    return params


def reference_forward_f32(x, params):
    """Pure f32 reference (PyTorch semantics)."""
    h = x.reshape(x.shape[0], -1)
    n = len(params)
    for i, (w, b) in enumerate(params):
        h = jnp.dot(h, w, precision=jax.lax.Precision.HIGHEST) + b
        if i < n - 1:
            h = jnp.maximum(h, 0.0)
    return h


def reference_forward_bf16(x, params):
    """Mirrors the kernel arithmetic: bf16 operands, f32 accumulate/bias/ReLU."""
    h = x.reshape(x.shape[0], -1).astype(jnp.bfloat16)
    n = len(params)
    for i, (w, b) in enumerate(params):
        acc = jnp.dot(h, w.astype(jnp.bfloat16),
                      preferred_element_type=jnp.float32) + b
        if i < n - 1:
            h = jnp.maximum(acc, 0.0).astype(jnp.bfloat16)
        else:
            h = acc
    return h


if __name__ == "__main__":
    param = {
        "dim_sequence": 8,
        "dim_features": 32,
        "continuation_dim_embedding_space": 16,
        "continuation_contrastive_dim_layers": [128, 64],
    }
    in_dim = param["dim_sequence"] * param["dim_features"]

    key = jax.random.PRNGKey(0)
    key, kx, kx2 = jax.random.split(key, 3)
    params = init_params(
        key,
        in_dim,
        param["continuation_contrastive_dim_layers"],
        param["continuation_dim_embedding_space"],
    )

    # One-time parameter padding / bf16 cast, hoisted out of the forward path.
    prepared = jax.tree_util.tree_map(jax.block_until_ready, prepare_params(params))
    forward = jax.jit(continuation_contrastive_forward)

    # --- small batch (module-consistent shapes) --------------------------------
    B = 2
    x = jax.random.normal(
        kx, (B, param["dim_sequence"], param["dim_features"]), jnp.float32)
    out = jax.block_until_ready(forward(x, prepared))
    assert out.shape == (B, param["continuation_dim_embedding_space"])
    # Exact arithmetic check vs. a reference that mirrors the kernel's bf16 math.
    ref_bf16 = reference_forward_bf16(x, params)
    assert jnp.allclose(out, ref_bf16, atol=2e-3, rtol=2e-3), "mismatch vs bf16 ref"
    # Semantic check vs. the pure-f32 module (bf16 weight quantization tolerance).
    ref_f32 = reference_forward_f32(x, params)
    assert jnp.allclose(out, ref_f32, atol=5e-2, rtol=5e-2), "mismatch vs f32 ref"

    # --- larger, non-divisible batch: exercises multi-tile ragged grid ---------
    B2 = 300
    x2 = jax.random.normal(
        kx2, (B2, param["dim_sequence"], param["dim_features"]), jnp.float32)
    out2 = jax.block_until_ready(forward(x2, prepared))
    assert out2.shape == (B2, param["continuation_dim_embedding_space"])
    ref2 = reference_forward_bf16(x2, params)
    assert jnp.allclose(out2, ref2, atol=2e-3, rtol=2e-3), "mismatch (batched) vs bf16 ref"

    print("KERNEL_OK")
</pallas_src>

<mosaic_0001>
module attributes {stable_mosaic.version = 11 : i64} {
  func.func @_mlp_kernel(%arg0: i32, %arg1: memref<2x256xf32, #tpu.memory_space<vmem>>, %arg2: memref<256x128xbf16, #tpu.memory_space<vmem>>, %arg3: memref<1x128xf32, #tpu.memory_space<vmem>>, %arg4: memref<128x128xbf16, #tpu.memory_space<vmem>>, %arg5: memref<1x128xf32, #tpu.memory_space<vmem>>, %arg6: memref<128x16xbf16, #tpu.memory_space<vmem>>, %arg7: memref<1x16xf32, #tpu.memory_space<vmem>>, %arg8: memref<2x16xf32, #tpu.memory_space<vmem>>) attributes {dimension_semantics = [#tpu.dimension_semantics<parallel>], iteration_bounds = array<i64: 1>, scalar_prefetch = 0 : i64, scratch_operands = 0 : i64, tpu.core_type = #tpu.core_type<tc>, window_params = [{transform_indices = @transform_0, window_bounds = array<i64: 2, 256>}, {pipeline_mode = #tpu.pipeline_mode<synchronous>, transform_indices = @transform_1, window_bounds = array<i64: 256, 128>}, {pipeline_mode = #tpu.pipeline_mode<synchronous>, transform_indices = @transform_2, window_bounds = array<i64: 1, 128>}, {pipeline_mode = #tpu.pipeline_mode<synchronous>, transform_indices = @transform_3, window_bounds = array<i64: 128, 128>}, {pipeline_mode = #tpu.pipeline_mode<synchronous>, transform_indices = @transform_4, window_bounds = array<i64: 1, 128>}, {pipeline_mode = #tpu.pipeline_mode<synchronous>, transform_indices = @transform_5, window_bounds = array<i64: 128, 16>}, {pipeline_mode = #tpu.pipeline_mode<synchronous>, transform_indices = @transform_6, window_bounds = array<i64: 1, 16>}, {transform_indices = @transform_7, window_bounds = array<i64: 2, 16>}]} {
    %c0 = arith.constant 0 : index
    %c0_0 = arith.constant 0 : index
    %0 = vector.load %arg1[%c0, %c0_0] : memref<2x256xf32, #tpu.memory_space<vmem>>, vector<2x256xf32>
    %1 = arith.truncf %0 : vector<2x256xf32> to vector<2x256xbf16>
    %c0_1 = arith.constant 0 : index
    %c0_2 = arith.constant 0 : index
    %2 = vector.load %arg2[%c0_1, %c0_2] : memref<256x128xbf16, #tpu.memory_space<vmem>>, vector<256x128xbf16>
    %c0_3 = arith.constant 0 : index
    %c0_4 = arith.constant 0 : index
    %3 = vector.load %arg3[%c0_3, %c0_4] : memref<1x128xf32, #tpu.memory_space<vmem>>, vector<1x128xf32>
    %cst = arith.constant dense<0.000000e+00> : vector<2x128xf32>
    %4 = tpu.matmul %1, %2, %cst {dimension_numbers = #tpu.dot_dimension_numbers<[1], [0], [0], [1], [0, 0, 1, 1], [], []>} : vector<2x256xbf16>, vector<256x128xbf16>, vector<2x128xf32> -> vector<2x128xf32>
    %5 = vector.broadcast %3 : vector<1x128xf32> to vector<2x128xf32>
    %6 = arith.addf %4, %5 : vector<2x128xf32>
    %cst_5 = arith.constant 0.000000e+00 : f32
    %7 = vector.broadcast %cst_5 : f32 to vector<2x128xf32>
    %8 = arith.maximumf %6, %7 : vector<2x128xf32>
    %9 = arith.truncf %8 : vector<2x128xf32> to vector<2x128xbf16>
    %c0_6 = arith.constant 0 : index
    %c0_7 = arith.constant 0 : index
    %10 = vector.load %arg4[%c0_6, %c0_7] : memref<128x128xbf16, #tpu.memory_space<vmem>>, vector<128x128xbf16>
    %c0_8 = arith.constant 0 : index
    %c0_9 = arith.constant 0 : index
    %11 = vector.load %arg5[%c0_8, %c0_9] : memref<1x128xf32, #tpu.memory_space<vmem>>, vector<1x128xf32>
    %cst_10 = arith.constant dense<0.000000e+00> : vector<2x128xf32>
    %12 = tpu.matmul %9, %10, %cst_10 {dimension_numbers = #tpu.dot_dimension_numbers<[1], [0], [0], [1], [0, 0, 1, 1], [], []>} : vector<2x128xbf16>, vector<128x128xbf16>, vector<2x128xf32> -> vector<2x128xf32>
    %13 = vector.broadcast %11 : vector<1x128xf32> to vector<2x128xf32>
    %14 = arith.addf %12, %13 : vector<2x128xf32>
    %cst_11 = arith.constant 0.000000e+00 : f32
    %15 = vector.broadcast %cst_11 : f32 to vector<2x128xf32>
    %16 = arith.maximumf %14, %15 : vector<2x128xf32>
    %17 = arith.truncf %16 : vector<2x128xf32> to vector<2x128xbf16>
    %c0_12 = arith.constant 0 : index
    %c0_13 = arith.constant 0 : index
    %18 = vector.load %arg6[%c0_12, %c0_13] : memref<128x16xbf16, #tpu.memory_space<vmem>>, vector<128x16xbf16>
    %c0_14 = arith.constant 0 : index
    %c0_15 = arith.constant 0 : index
    %19 = vector.load %arg7[%c0_14, %c0_15] : memref<1x16xf32, #tpu.memory_space<vmem>>, vector<1x16xf32>
    %cst_16 = arith.constant dense<0.000000e+00> : vector<2x16xf32>
    %20 = tpu.matmul %17, %18, %cst_16 {dimension_numbers = #tpu.dot_dimension_numbers<[1], [0], [0], [1], [0, 0, 1, 1], [], []>} : vector<2x128xbf16>, vector<128x16xbf16>, vector<2x16xf32> -> vector<2x16xf32>
    %21 = vector.broadcast %19 : vector<1x16xf32> to vector<2x16xf32>
    %22 = arith.addf %20, %21 : vector<2x16xf32>
    %c0_17 = arith.constant 0 : index
    %c0_18 = arith.constant 0 : index
    %23 = vector.load %arg8[%c0_17, %c0_18] : memref<2x16xf32, #tpu.memory_space<vmem>>, vector<2x16xf32>
    tpu.vector_store %arg8[%c0_17, %c0_18], %22 {strides = array<i32>} : memref<2x16xf32, #tpu.memory_space<vmem>>, vector<2x16xf32>,
    return
  }
  func.func @transform_0(%arg0: i32) -> (i32, i32) {
    %c0_i32 = arith.constant 0 : i32
    %c0_i32_0 = arith.constant 0 : i32
    return %arg0, %c0_i32 : i32, i32
  }
  func.func @transform_1(%arg0: i32) -> (i32, i32) {
    %c0_i32 = arith.constant 0 : i32
    %c0_i32_0 = arith.constant 0 : i32
    %c0_i32_1 = arith.constant 0 : i32
    return %c0_i32, %c0_i32_0 : i32, i32
  }
  func.func @transform_2(%arg0: i32) -> (i32, i32) {
    %c0_i32 = arith.constant 0 : i32
    %c0_i32_0 = arith.constant 0 : i32
    %c0_i32_1 = arith.constant 0 : i32
    return %c0_i32, %c0_i32_0 : i32, i32
  }
  func.func @transform_3(%arg0: i32) -> (i32, i32) {
    %c0_i32 = arith.constant 0 : i32
    %c0_i32_0 = arith.constant 0 : i32
    %c0_i32_1 = arith.constant 0 : i32
    return %c0_i32, %c0_i32_0 : i32, i32
  }
  func.func @transform_4(%arg0: i32) -> (i32, i32) {
    %c0_i32 = arith.constant 0 : i32
    %c0_i32_0 = arith.constant 0 : i32
    %c0_i32_1 = arith.constant 0 : i32
    return %c0_i32, %c0_i32_0 : i32, i32
  }
  func.func @transform_5(%arg0: i32) -> (i32, i32) {
    %c0_i32 = arith.constant 0 : i32
    %c0_i32_0 = arith.constant 0 : i32
    %c0_i32_1 = arith.constant 0 : i32
    return %c0_i32, %c0_i32_0 : i32, i32
  }
  func.func @transform_6(%arg0: i32) -> (i32, i32) {
    %c0_i32 = arith.constant 0 : i32
    %c0_i32_0 = arith.constant 0 : i32
    %c0_i32_1 = arith.constant 0 : i32
    return %c0_i32, %c0_i32_0 : i32, i32
  }
  func.func @transform_7(%arg0: i32) -> (i32, i32) {
    %c0_i32 = arith.constant 0 : i32
    %c0_i32_0 = arith.constant 0 : i32
    return %arg0, %c0_i32 : i32, i32
  }
}

</mosaic_0001>

<llo_original>
// kernel: continuation_contrastive_forward.1
$region0: #{continuation_contrastive_forward.1}
  #allocation0 [shape = 'u32[]', space=smem, size = 0x4, offset = 0x4, fixed_abs, tag = 'smem constant byte address 0x4 - core index']
  #allocation1 [shape = 'u32[72,128]{1,0:T(1,128)}', space=vmem, size = 0x9000, scoped, tag = 'internal scratch']
  %s0 = inlined_call_operand.vmem [shape: f32[2,256], index: 0, kind: input, shape index: {}]
  %s1 = inlined_call_operand.hbm [shape: bf16[256,128], index: 1, kind: input, shape index: {}]
  %s2 = inlined_call_operand.vmem [shape: f32[1,128], index: 2, kind: input, shape index: {}]
  %s3 = inlined_call_operand.vmem [shape: bf16[128,128], index: 3, kind: input, shape index: {}]
  %s4 = inlined_call_operand.vmem [shape: f32[1,128], index: 4, kind: input, shape index: {}]
  %s5 = inlined_call_operand.vmem [shape: bf16[128,16], index: 5, kind: input, shape index: {}]
  %s6 = inlined_call_operand.vmem [shape: f32[1,16], index: 6, kind: input, shape index: {}]
  %s7 = inlined_call_operand.hbm [shape: f32[2,16], index: 7, kind: output, shape index: {}]
  %s8 = sld [smem:[#allocation0]]
  $region42: #{continuation_contrastive_forward.1} parent=0
    _
  %s10 = ssub.s32 1, %s8
  %s11 = scalar_select 0, %s10, %s8
  $region1: #{continuation_contrastive_forward.1} parent=0
    #allocation2 [shape = 'u8[65536]{0}', space=vmem, size = 0x10000, scoped, tag = 'input window, operand 1, single buffered']
    #allocation3 [shape = 's32[1]{0}', space=sflag, size = 0x4, scoped, tag = 'scoped memory for continuation_contrastive_forward.1']
    #allocation4 [shape = 's32[1]{0}', space=sflag, size = 0x4, scoped, tag = 'scoped memory for continuation_contrastive_forward.1']
    #allocation5 [shape = 'u8[1024]{0}', space=vmem, size = 0x400, scoped, tag = 'output window, operand 0, single buffered']
    %12 = vsyncpa [#allocation3], 0
    %13 = vsyncpa [#allocation4], 0
    // Predicated region
    $region2: #{continuation_contrastive_forward.1} parent=1 // pred_check
      _
    $region3: #{continuation_contrastive_forward.1} parent=1 // pred_check_branch
      %15 = sbr.rel (0) target = $region5
    $region4: #{continuation_contrastive_forward.1} parent=1 // pred_region
      _
    $region5: #{continuation_contrastive_forward.1} parent=1 // pred_fallthru
      _
    // Predicated region
    $region6: #{continuation_contrastive_forward.1} parent=1 // pred_check
      _
    $region7: #{continuation_contrastive_forward.1} parent=1 // pred_check_branch
      %17 = sbr.rel (0) target = $region9
    $region8: #{continuation_contrastive_forward.1} parent=1 // pred_region
      %19 = vsyncadd [#allocation3], 0
      %s20 = sshll.u32 %s1, 4
      %s21 = int_to_ptr.hbm [resolvable:$true] %s20
      %s22 = sshll.u32 [#allocation2], 4
      %s23 = int_to_ptr.vmem [resolvable:$true] %s22
      %28 = dma.hbm_to_vmem [thread:$0]  %s21, 2048, %s23, [#allocation3], 64, 64, 4
    $region9: #{continuation_contrastive_forward.1} parent=1 // pred_fallthru
      _
    // Predicated region
    $region10: #{continuation_contrastive_forward.1} parent=1 // pred_check
      _
    $region11: #{continuation_contrastive_forward.1} parent=1 // pred_check_branch
      %30 = sbr.rel (0) target = $region13
    $region12: #{continuation_contrastive_forward.1} parent=1 // pred_region
      _
    $region13: #{continuation_contrastive_forward.1} parent=1 // pred_fallthru
      _
    // Predicated region
    $region14: #{continuation_contrastive_forward.1} parent=1 // pred_check
      _
    $region15: #{continuation_contrastive_forward.1} parent=1 // pred_check_branch
      %32 = sbr.rel (0) target = $region17
    $region16: #{continuation_contrastive_forward.1} parent=1 // pred_region
      _
    $region17: #{continuation_contrastive_forward.1} parent=1 // pred_fallthru
      _
    // Predicated region
    $region18: #{continuation_contrastive_forward.1} parent=1 // pred_check
      _
    $region19: #{continuation_contrastive_forward.1} parent=1 // pred_check_branch
      %34 = sbr.rel (0) target = $region21
    $region20: #{continuation_contrastive_forward.1} parent=1 // pred_region
      _
    $region21: #{continuation_contrastive_forward.1} parent=1 // pred_fallthru
      _
    // Predicated region
    $region22: #{continuation_contrastive_forward.1} parent=1 // pred_check
      _
    $region23: #{continuation_contrastive_forward.1} parent=1 // pred_check_branch
      %36 = sbr.rel (0) target = $region25
    $region24: #{continuation_contrastive_forward.1} parent=1 // pred_region
      _
    $region25: #{continuation_contrastive_forward.1} parent=1 // pred_fallthru
      _
    // Predicated region
    $region26: #{continuation_contrastive_forward.1} parent=1 // pred_check
      _
    $region27: #{continuation_contrastive_forward.1} parent=1 // pred_check_branch
      %38 = sbr.rel (0) target = $region29
    $region28: #{continuation_contrastive_forward.1} parent=1 // pred_region
      _
    $region29: #{continuation_contrastive_forward.1} parent=1 // pred_fallthru
      _
    // Predicated region
    $region30: #{continuation_contrastive_forward.1} parent=1 // pred_check
      _
    $region31: #{continuation_contrastive_forward.1} parent=1 // pred_check_branch
      %40 = sbr.rel (0) target = $region33
    $region32: #{continuation_contrastive_forward.1} parent=1 // pred_region
      %42 = dma.done [#allocation3], 2048
    $region33: #{continuation_contrastive_forward.1} parent=1 // pred_fallthru
      _
    %v43 = vld [vmem:[%s0] sm:$0xf]
    %45 = vst [vmem:[#allocation1] ss:$4 sm:$0xff] %v43
    %v46 = vld.sshfl [vmem:[#allocation1] sm:$0xff pattern:$0x73625140]
    %v47 = vld.sshfl [vmem:[#allocation1 + $0x8] sm:$0xff pattern:$0x73625140]
    %v50 = vpack.c.bf16 %v46, %v46
    %v51 = vpack.c.bf16 %v47, %v47
    %v52 = vld [vmem:[#allocation2] sm:$0xf]
    %v53 = vld [vmem:[#allocation2 + $0x4] sm:$0xf]
    %v54 = vld [vmem:[#allocation2 + $0x8] sm:$0xf]
    %v55 = vld [vmem:[#allocation2 + $0xc] sm:$0xf]
    %v56 = vld [vmem:[#allocation2 + $0x10] sm:$0xf]
    %v57 = vld [vmem:[#allocation2 + $0x14] sm:$0xf]
    %v58 = vld [vmem:[#allocation2 + $0x18] sm:$0xf]
    %v59 = vld [vmem:[#allocation2 + $0x1c] sm:$0xf]
    %v60 = vld [vmem:[#allocation2 + $0x20] sm:$0xf]
    %v61 = vld [vmem:[#allocation2 + $0x24] sm:$0xf]
    %v62 = vld [vmem:[#allocation2 + $0x28] sm:$0xf]
    %v63 = vld [vmem:[#allocation2 + $0x2c] sm:$0xf]
    %v64 = vld [vmem:[#allocation2 + $0x30] sm:$0xf]
    %v65 = vld [vmem:[#allocation2 + $0x34] sm:$0xf]
    %v66 = vld [vmem:[#allocation2 + $0x38] sm:$0xf]
    %v67 = vld [vmem:[#allocation2 + $0x3c] sm:$0xf]
    %v68 = vld [vmem:[#allocation2 + $0x40] sm:$0xf]
    %v69 = vld [vmem:[#allocation2 + $0x44] sm:$0xf]
    %v70 = vld [vmem:[#allocation2 + $0x48] sm:$0xf]
    %v71 = vld [vmem:[#allocation2 + $0x4c] sm:$0xf]
    %v72 = vld [vmem:[#allocation2 + $0x50] sm:$0xf]
    %v73 = vld [vmem:[#allocation2 + $0x54] sm:$0xf]
    %v74 = vld [vmem:[#allocation2 + $0x58] sm:$0xf]
    %v75 = vld [vmem:[#allocation2 + $0x5c] sm:$0xf]
    %v76 = vld [vmem:[#allocation2 + $0x60] sm:$0xf]
    %v77 = vld [vmem:[#allocation2 + $0x64] sm:$0xf]
    %v78 = vld [vmem:[#allocation2 + $0x68] sm:$0xf]
    %v79 = vld [vmem:[#allocation2 + $0x6c] sm:$0xf]
    %v80 = vld [vmem:[#allocation2 + $0x70] sm:$0xf]
    %v81 = vld [vmem:[#allocation2 + $0x74] sm:$0xf]
    %v82 = vld [vmem:[#allocation2 + $0x78] sm:$0xf]
    %v83 = vld [vmem:[#allocation2 + $0x7c] sm:$0xf]
    %v84 = vld [vmem:[%s2] sm:$0x1]
    %v86 = vperm.slane %v84, 0
    %v120 = vunpack.c.l.b16 %v52
    %v121 = vunpack.c.l.b16 %v53
    %v122 = vunpack.c.l.b16 %v54
    %v123 = vunpack.c.l.b16 %v55
    %v124 = vunpack.c.l.b16 %v56
    %v125 = vunpack.c.l.b16 %v57
    %v126 = vunpack.c.l.b16 %v58
    %v127 = vunpack.c.l.b16 %v59
    %v128 = vunpack.c.l.b16 %v60
    %v129 = vunpack.c.l.b16 %v61
    %v130 = vunpack.c.l.b16 %v62
    %v131 = vunpack.c.l.b16 %v63
    %v132 = vunpack.c.l.b16 %v64
    %v133 = vunpack.c.l.b16 %v65
    %v134 = vunpack.c.l.b16 %v66
    %v135 = vunpack.c.l.b16 %v67
    %v136 = vunpack.c.l.b16 %v68
    %v137 = vunpack.c.l.b16 %v69
    %v138 = vunpack.c.l.b16 %v70
    %v139 = vunpack.c.l.b16 %v71
    %v140 = vunpack.c.l.b16 %v72
    %v141 = vunpack.c.l.b16 %v73
    %v142 = vunpack.c.l.b16 %v74
    %v143 = vunpack.c.l.b16 %v75
    %v144 = vunpack.c.l.b16 %v76
    %v145 = vunpack.c.l.b16 %v77
    %v146 = vunpack.c.l.b16 %v78
    %v147 = vunpack.c.l.b16 %v79
    %v148 = vunpack.c.l.b16 %v80
    %v149 = vunpack.c.l.b16 %v81
    %v150 = vunpack.c.l.b16 %v82
    %v151 = vunpack.c.l.b16 %v83
    %v152 = vpack.c.b16 %v121, %v120
    %v153 = vpack.c.b16 %v123, %v122
    %v154 = vpack.c.b16 %v125, %v124
    %v155 = vpack.c.b16 %v127, %v126
    %v156 = vpack.c.b16 %v129, %v128
    %v157 = vpack.c.b16 %v131, %v130
    %v158 = vpack.c.b16 %v133, %v132
    %v159 = vpack.c.b16 %v135, %v134
    %v160 = vpack.c.b16 %v137, %v136
    %v161 = vpack.c.b16 %v139, %v138
    %v162 = vpack.c.b16 %v141, %v140
    %v163 = vpack.c.b16 %v143, %v142
    %v164 = vpack.c.b16 %v145, %v144
    %v165 = vpack.c.b16 %v147, %v146
    %v166 = vpack.c.b16 %v149, %v148
    %v167 = vpack.c.b16 %v151, %v150
    %184 = vmatpush.bf16.msra.mxu0 %v159
    %185 = vmatpush.bf16.msra.mxu0 %v158
    %186 = vmatpush.bf16.msra.mxu0 %v157
    %187 = vmatpush.bf16.msra.mxu0 %v156
    %188 = vmatpush.bf16.msra.mxu0 %v155
    %189 = vmatpush.bf16.msra.mxu0 %v154
    %190 = vmatpush.bf16.msra.mxu0 %v153
    %191 = vmatpush.bf16.msra.mxu0 %v152
    %192 = vmatmul.bf16.gmra.mxu0 %v50
    %v193 = vpop.f32.mrf.mxu0
    %v194 = vadd.f32 %v86, %v193
    %v195 = vpop.f32.mrf.mxu0
    %196 = vdwg.mxu0
    %197 = vmatpush.bf16.msra.mxu0 %v167
    %198 = vmatpush.bf16.msra.mxu0 %v166
    %199 = vmatpush.bf16.msra.mxu0 %v165
    %200 = vmatpush.bf16.msra.mxu0 %v164
    %201 = vmatpush.bf16.msra.mxu0 %v163
    %202 = vmatpush.bf16.msra.mxu0 %v162
    %203 = vmatpush.bf16.msra.mxu0 %v161
    %204 = vmatpush.bf16.msra.mxu0 %v160
    %205 = vmatmul.bf16.gmra.mxu0 %v51
    %v206 = vpop.f32.mrf.mxu0
    %v207 = vadd.f32 %v194, %v206
    %v208 = vpop.f32.mrf.mxu0
    %209 = vdwg.mxu0
    %v210 = vmax.f32 %v207, 0.0
    %v211 = vpack.c.bf16 %v210, %v210
    %v212 = vld [vmem:[%s3] sm:$0xf]
    %v213 = vld [vmem:[%s3 + $0x4] sm:$0xf]
    %v214 = vld [vmem:[%s3 + $0x8] sm:$0xf]
    %v215 = vld [vmem:[%s3 + $0xc] sm:$0xf]
    %v216 = vld [vmem:[%s3 + $0x10] sm:$0xf]
    %v217 = vld [vmem:[%s3 + $0x14] sm:$0xf]
    %v218 = vld [vmem:[%s3 + $0x18] sm:$0xf]
    %v219 = vld [vmem:[%s3 + $0x1c] sm:$0xf]
    %v220 = vld [vmem:[%s3 + $0x20] sm:$0xf]
    %v221 = vld [vmem:[%s3 + $0x24] sm:$0xf]
    %v222 = vld [vmem:[%s3 + $0x28] sm:$0xf]
    %v223 = vld [vmem:[%s3 + $0x2c] sm:$0xf]
    %v224 = vld [vmem:[%s3 + $0x30] sm:$0xf]
    %v225 = vld [vmem:[%s3 + $0x34] sm:$0xf]
    %v226 = vld [vmem:[%s3 + $0x38] sm:$0xf]
    %v227 = vld [vmem:[%s3 + $0x3c] sm:$0xf]
    %v228 = vld [vmem:[%s4] sm:$0x1]
    %v230 = vperm.slane %v228, 0
    %v248 = vunpack.c.l.b16 %v212
    %v249 = vunpack.c.l.b16 %v213
    %v250 = vunpack.c.l.b16 %v214
    %v251 = vunpack.c.l.b16 %v215
    %v252 = vunpack.c.l.b16 %v216
    %v253 = vunpack.c.l.b16 %v217
    %v254 = vunpack.c.l.b16 %v218
    %v255 = vunpack.c.l.b16 %v219
    %v256 = vunpack.c.l.b16 %v220
    %v257 = vunpack.c.l.b16 %v221
    %v258 = vunpack.c.l.b16 %v222
    %v259 = vunpack.c.l.b16 %v223
    %v260 = vunpack.c.l.b16 %v224
    %v261 = vunpack.c.l.b16 %v225
    %v262 = vunpack.c.l.b16 %v226
    %v263 = vunpack.c.l.b16 %v227
    %v264 = vpack.c.b16 %v249, %v248
    %v265 = vpack.c.b16 %v251, %v250
    %v266 = vpack.c.b16 %v253, %v252
    %v267 = vpack.c.b16 %v255, %v254
    %v268 = vpack.c.b16 %v257, %v256
    %v269 = vpack.c.b16 %v259, %v258
    %v270 = vpack.c.b16 %v261, %v260
    %v271 = vpack.c.b16 %v263, %v262
    %280 = vmatpush.bf16.msra.mxu0 %v271
    %281 = vmatpush.bf16.msra.mxu0 %v270
    %282 = vmatpush.bf16.msra.mxu0 %v269
    %283 = vmatpush.bf16.msra.mxu0 %v268
    %284 = vmatpush.bf16.msra.mxu0 %v267
    %285 = vmatpush.bf16.msra.mxu0 %v266
    %286 = vmatpush.bf16.msra.mxu0 %v265
    %287 = vmatpush.bf16.msra.mxu0 %v264
    %288 = vmatmul.bf16.gmra.mxu0 %v211
    %v289 = vpop.f32.mrf.mxu0
    %v290 = vadd.f32 %v230, %v289
    %v291 = vpop.f32.mrf.mxu0
    %292 = vdwg.mxu0
    %v293 = vmax.f32 %v290, 0.0
    %v294 = vpack.c.bf16 %v293, %v293
    %v295 = vld [vmem:[%s5] sm:$0xf]
    %v296 = vld [vmem:[%s5 + $0x4] sm:$0xf]
    %v297 = vld [vmem:[%s5 + $0x8] sm:$0xf]
    %v298 = vld [vmem:[%s5 + $0xc] sm:$0xf]
    %v299 = vld [vmem:[%s5 + $0x10] sm:$0xf]
    %v300 = vld [vmem:[%s5 + $0x14] sm:$0xf]
    %v301 = vld [vmem:[%s5 + $0x18] sm:$0xf]
    %v302 = vld [vmem:[%s5 + $0x1c] sm:$0xf]
    %v303 = vld [vmem:[%s5 + $0x20] sm:$0xf]
    %v304 = vld [vmem:[%s5 + $0x24] sm:$0xf]
    %v305 = vld [vmem:[%s5 + $0x28] sm:$0xf]
    %v306 = vld [vmem:[%s5 + $0x2c] sm:$0xf]
    %v307 = vld [vmem:[%s5 + $0x30] sm:$0xf]
    %v308 = vld [vmem:[%s5 + $0x34] sm:$0xf]
    %v309 = vld [vmem:[%s5 + $0x38] sm:$0xf]
    %v310 = vld [vmem:[%s5 + $0x3c] sm:$0xf]
    %v311 = vld [vmem:[%s6] sm:$0x1]
    %v313 = vperm.slane %v311, 0
    %v331 = vunpack.c.l.b16 %v295
    %v332 = vunpack.c.l.b16 %v296
    %v333 = vunpack.c.l.b16 %v297
    %v334 = vunpack.c.l.b16 %v298
    %v335 = vunpack.c.l.b16 %v299
    %v336 = vunpack.c.l.b16 %v300
    %v337 = vunpack.c.l.b16 %v301
    %v338 = vunpack.c.l.b16 %v302
    %v339 = vunpack.c.l.b16 %v303
    %v340 = vunpack.c.l.b16 %v304
    %v341 = vunpack.c.l.b16 %v305
    %v342 = vunpack.c.l.b16 %v306
    %v343 = vunpack.c.l.b16 %v307
    %v344 = vunpack.c.l.b16 %v308
    %v345 = vunpack.c.l.b16 %v309
    %v346 = vunpack.c.l.b16 %v310
    %v347 = vpack.c.b16 %v332, %v331
    %v348 = vpack.c.b16 %v334, %v333
    %v349 = vpack.c.b16 %v336, %v335
    %v350 = vpack.c.b16 %v338, %v337
    %v351 = vpack.c.b16 %v340, %v339
    %v352 = vpack.c.b16 %v342, %v341
    %v353 = vpack.c.b16 %v344, %v343
    %v354 = vpack.c.b16 %v346, %v345
    %363 = vmatpush.bf16.msra.mxu0 %v354
    %364 = vmatpush.bf16.msra.mxu0 %v353
    %365 = vmatpush.bf16.msra.mxu0 %v352
    %366 = vmatpush.bf16.msra.mxu0 %v351
    %367 = vmatpush.bf16.msra.mxu0 %v350
    %368 = vmatpush.bf16.msra.mxu0 %v349
    %369 = vmatpush.bf16.msra.mxu0 %v348
    %370 = vmatpush.bf16.msra.mxu0 %v347
    %371 = vmatmul.bf16.gmra.mxu0 %v294
    %v372 = vpop.f32.mrf.mxu0
    %v373 = vadd.f32 %v313, %v372
    %v374 = vpop.f32.mrf.mxu0
    %375 = vdwg.mxu0
    %vm376 = vcmask 123904
    %377 = vst.msk [vmem:[#allocation5] sm:$0x3] %vm376, %v373
    // Predicated region
    $region34: #{continuation_contrastive_forward.1} parent=1 // pred_check
      _
    $region35: #{continuation_contrastive_forward.1} parent=1 // pred_check_branch
      %379 = sbr.rel (0) target = $region37
    $region36: #{continuation_contrastive_forward.1} parent=1 // pred_region
      %381 = vsyncadd [#allocation4], 0
      %s383 = sshll.u32 [#allocation5], 4
      %s384 = int_to_ptr.vmem [resolvable:$true] %s383
      %s385 = sshll.u32 %s7, 4
      %s386 = int_to_ptr.hbm [resolvable:$true] %s385
      %388 = dma.vmem_to_hbm [thread:$0]  %s384, 32, %s386, [#allocation4]
    $region37: #{continuation_contrastive_forward.1} parent=1 // pred_fallthru
      _
    // Predicated region
    $region38: #{continuation_contrastive_forward.1} parent=1 // pred_check
      _
    $region39: #{continuation_contrastive_forward.1} parent=1 // pred_check_branch
      %390 = sbr.rel (0) target = $region41
    $region40: #{continuation_contrastive_forward.1} parent=1 // pred_region
      %392 = dma.done [#allocation4], 32
    $region41: #{continuation_contrastive_forward.1} parent=1 // pred_fallthru
      _
    %393 = vsyncpa [#allocation3], 1
    %394 = vsyncpa [#allocation4], 1

</llo_original>
